<compile_context>
chip_gen: v6e
topology: v6e:2x2x1
jax: 0.10.0
libtpu: 0.0.40
codegen_flags: <defaults>
</compile_context>

<pallas_src>
import math
import functools

import jax
import jax.numpy as jnp
from jax import lax
from jax.experimental import pallas as pl
from jax.experimental.pallas import tpu as pltpu


_TILE_CANDIDATES = (512, 256, 128, 64, 32, 16, 8)
_LANE = 128
_MiB = 1024 * 1024


def _divisor_tiles(dim):
    cands = [t for t in _TILE_CANDIDATES if t <= dim and dim % t == 0]
    return cands if cands else [dim]


def _pad_lane(n):
    return max(_LANE, ((n + _LANE - 1) // _LANE) * _LANE)


# ----------------------------------------------------------------------------
# Kernel 1: QKV projection, written directly in head-major (B, 3H, S, d).
#   x : (B, S, D), W : (3D, D) native PyTorch layout, b : (1, 3D)
# ----------------------------------------------------------------------------
def _qkv_proj_kernel(x_ref, w_ref, b_ref, o_ref, acc_ref, *, n_heads, head_dim):
    k_step = pl.program_id(2)

    @pl.when(k_step == 0)
    def _():
        acc_ref[...] = jnp.zeros_like(acc_ref)

    # Contract the last dim of both operands: W keeps its (out, in) layout.
    acc_ref[...] += lax.dot_general(
        x_ref[...], w_ref[...],
        dimension_numbers=(((1,), (1,)), ((), ())),
        preferred_element_type=jnp.float32)

    @pl.when(k_step == pl.num_programs(2) - 1)
    def _():
        y = acc_ref[...] + b_ref[...].astype(jnp.float32)        # (tm, 3D)
        y = y.astype(o_ref.dtype)
        d = head_dim
        # Scatter the (tm, 3D) row slab into the head-major (3H, tm, d) block
        # once per tile (in VMEM) — this is what removes the HBM transpose.
        for j in range(3 * n_heads):
            o_ref[j, :, :] = y[:, j * d:(j + 1) * d]


def qkv_projection(x, w, bias2d, *, num_heads, tm=None, tk=None,
                   out_dtype=None, vmem_budget=32 * _MiB):
    """x: (B, S, D); w: (3D, D); bias2d: (1, 3D).
    Returns packed QKV in head-major layout (B, 3H, S, d):
      heads [0:H) = Q (already softmax-scaled by the caller), [H:2H) = K,
      [2H:3H) = V."""
    B, S, D = x.shape
    H = num_heads
    d = D // H
    N = 3 * D
    assert w.shape == (N, D) and bias2d.shape == (1, N)
    out_dtype = out_dtype or x.dtype
    in_b = x.dtype.itemsize
    w_b = w.dtype.itemsize
    out_b = jnp.dtype(out_dtype).itemsize

    # Keep the whole weight resident in VMEM when it fits (it is then DMA'd
    # once for the entire grid); otherwise stream K blocks with an fp32 acc.
    if tk is None:
        if N * D * w_b <= 8 * _MiB or D % _LANE != 0:
            tk = D
        else:
            opts = [t for t in (512, 256, 128) if D % t == 0]
            tk = opts[0] if opts else D
    n_k = D // tk

    def est(tm_):
        return (2 * tm_ * _pad_lane(tk) * in_b            # x block (dbl buf)
                + 2 * N * _pad_lane(tk) * w_b             # W block
                + 2 * 8 * _pad_lane(N) * 4                # bias (tiny)
                + 2 * 3 * H * tm_ * _pad_lane(d) * out_b  # head-major out
                + tm_ * _pad_lane(N) * 4)                 # fp32 accumulator

    if tm is None:
        tiles = _divisor_tiles(S)
        tm = next((t for t in tiles if est(t) <= vmem_budget), tiles[-1])
    assert S % tm == 0

    kernel = functools.partial(_qkv_proj_kernel, n_heads=H, head_dim=d)
    vmem_limit = int(min(max(2 * est(tm), 32 * _MiB), 64 * _MiB))
    return pl.pallas_call(
        kernel,
        out_shape=jax.ShapeDtypeStruct((B, 3 * H, S, d), out_dtype),
        grid_spec=pltpu.PrefetchScalarGridSpec(
            num_scalar_prefetch=0,
            grid=(B, S // tm, n_k),
            in_specs=[
                pl.BlockSpec((pl.Squeezed(), tm, tk), lambda b, i, k: (b, i, k)),
                pl.BlockSpec((N, tk), lambda b, i, k: (0, k)),
                pl.BlockSpec((1, N), lambda b, i, k: (0, 0)),
            ],
            out_specs=pl.BlockSpec((pl.Squeezed(), 3 * H, tm, d),
                                   lambda b, i, k: (b, 0, i, 0)),
            scratch_shapes=[pltpu.VMEM((tm, N), jnp.float32)],
        ),
        compiler_params=pltpu.CompilerParams(
            dimension_semantics=("parallel", "parallel", "arbitrary"),
            vmem_limit_bytes=vmem_limit),
    )(x, w, bias2d)


# ----------------------------------------------------------------------------
# Kernel 2: flash attention with online softmax.
#   Kernel refs: q (H, tq, d), k/v (H, tkv, d); output block (tq, H*d).
# ----------------------------------------------------------------------------
def _flash_attn_kernel(q_ref, k_ref, v_ref, o_ref, m_sc, l_sc, acc_sc, *,
                       causal, n_q, q_blk, kv_blk):
    bq = pl.program_id(0)            # collapsed (batch, q-block) index
    ki = pl.program_id(1)            # kv-block index (reduction axis)
    qi = bq % n_q

    @pl.when(ki == 0)
    def _():
        m_sc[...] = jnp.full(m_sc.shape, -jnp.inf, dtype=m_sc.dtype)
        l_sc[...] = jnp.zeros_like(l_sc)
        acc_sc[...] = jnp.zeros_like(acc_sc)

    def compute(apply_mask):
        # Softmax scale is already folded into the Q rows of Wqkv / bias.
        q = q_ref[...]                                             # (H,tq,d)
        k = k_ref[...]                                             # (H,tkv,d)
        s = lax.dot_general(                                       # (H,tq,tkv)
            q, k, dimension_numbers=(((2,), (2,)), ((0,), (0,))),
            preferred_element_type=jnp.float32)
        if apply_mask:
            # 2-D (tq, tkv) iota mask, broadcast over heads in the select.
            rows = qi * q_blk + lax.broadcasted_iota(
                jnp.int32, (q_blk, kv_blk), 0)
            cols = ki * kv_blk + lax.broadcasted_iota(
                jnp.int32, (q_blk, kv_blk), 1)
            s = jnp.where((cols <= rows)[None, :, :], s, -jnp.inf)
        m_prev = m_sc[...]
        m_new = jnp.maximum(m_prev, s.max(axis=-1, keepdims=True))
        alpha = jnp.exp(m_prev - m_new)
        p = jnp.exp(s - m_new)
        l_sc[...] = alpha * l_sc[...] + p.sum(axis=-1, keepdims=True)
        pv = lax.dot_general(                                      # (H,tq,d)
            p.astype(v_ref.dtype), v_ref[...],
            dimension_numbers=(((2,), (1,)), ((0,), (0,))),
            preferred_element_type=jnp.float32)
        acc_sc[...] = alpha * acc_sc[...] + pv
        m_sc[...] = m_new

    if causal:
        # Invariant: ki runs 0..n_kv-1 ascending and ki == 0 is never skipped
        # (column 0 is unmasked for every row), so m_sc is finite before any
        # block containing fully masked rows -> no inf - inf NaNs below.
        q_first = qi * q_blk
        k_first = ki * kv_blk
        run = k_first <= q_first + (q_blk - 1)         # block not fully masked
        straddles = k_first + (kv_blk - 1) > q_first   # needs element mask

        @pl.when(jnp.logical_and(run, straddles))
        def _():
            compute(apply_mask=True)

        @pl.when(jnp.logical_and(run, jnp.logical_not(straddles)))
        def _():
            compute(apply_mask=False)
    else:
        compute(apply_mask=False)

    @pl.when(ki == pl.num_programs(1) - 1)
    def _():
        l = l_sc[...]
        inv_l = pl.reciprocal(l, approx=True)           # EUP (free-ish slot)
        inv_l = inv_l * (2.0 - l * inv_l)               # one Newton step
        out = acc_sc[...] * inv_l                       # (H, tq, d) fp32
        n_heads, _, hd = acc_sc.shape
        # The (tq, H*d) output block is lane-dense, so the HBM writeback is a
        # single unmasked DMA; heads land at their static lane offsets here.
        for h in range(n_heads):
            o_ref[:, h * hd:(h + 1) * hd] = out[h].astype(o_ref.dtype)


def flash_attention(qkv_heads, *, num_heads, causal, q_block=None,
                    kv_block=None, out_dtype=None, vmem_budget=32 * _MiB):
    """qkv_heads: (B, 3H, S, d) head-major packed QKV (from qkv_projection).
    Returns the attention context as (B, S, H*d)."""
    B, three_h, S, d = qkv_heads.shape
    H = num_heads
    assert three_h == 3 * H
    D = H * d
    out_dtype = out_dtype or qkv_heads.dtype
    in_b = qkv_heads.dtype.itemsize
    out_b = jnp.dtype(out_dtype).itemsize

    def est(tq_, tkv_):
        return (2 * H * tq_ * _pad_lane(d) * in_b       # q block (dbl buf)
                + 4 * H * tkv_ * _pad_lane(d) * in_b    # k + v blocks
                + 2 * tq_ * _pad_lane(D) * out_b        # out block
                + 2 * H * tq_ * _LANE * 4               # m, l scratch
                + H * tq_ * _pad_lane(d) * 4)           # acc scratch

    tiles = _divisor_tiles(S)
    tq_auto, tkv_auto = tiles[-1], tiles[-1]
    found = False
    for cand_q in tiles:
        for cand_kv in tiles:
            if est(cand_q, cand_kv) <= vmem_budget:
                tq_auto, tkv_auto = cand_q, cand_kv
                found = True
                break
        if found:
            break
    tq = q_block if q_block is not None else tq_auto
    tkv = kv_block if kv_block is not None else tkv_auto
    assert S % tq == 0 and S % tkv == 0
    n_q, n_kv = S // tq, S // tkv

    q_map = lambda bq, ki: (bq // n_q, 0, bq % n_q, 0)
    if causal:
        def kv_index(bq, ki):
            # Clamp to the last block this q-tile actually needs: consecutive
            # identical block indices make Pallas skip the K/V DMAs for the
            # fully masked iterations (their compute is skipped in-kernel).
            last_needed = ((bq % n_q) * tq + tq - 1) // tkv
            return jnp.minimum(ki, last_needed)
        k_map = lambda bq, ki: (bq // n_q, 1, kv_index(bq, ki), 0)
        v_map = lambda bq, ki: (bq // n_q, 2, kv_index(bq, ki), 0)
    else:
        k_map = lambda bq, ki: (bq // n_q, 1, ki, 0)
        v_map = lambda bq, ki: (bq // n_q, 2, ki, 0)
    o_map = lambda bq, ki: (bq // n_q, bq % n_q, 0)

    kernel = functools.partial(_flash_attn_kernel, causal=causal, n_q=n_q,
                               q_blk=tq, kv_blk=tkv)
    vmem_limit = int(min(max(2 * est(tq, tkv), 32 * _MiB), 64 * _MiB))
    return pl.pallas_call(
        kernel,
        out_shape=jax.ShapeDtypeStruct((B, S, D), out_dtype),
        grid_spec=pltpu.PrefetchScalarGridSpec(
            num_scalar_prefetch=0,
            grid=(B * n_q, n_kv),
            in_specs=[
                pl.BlockSpec((pl.Squeezed(), H, tq, d), q_map),
                pl.BlockSpec((pl.Squeezed(), H, tkv, d), k_map),
                pl.BlockSpec((pl.Squeezed(), H, tkv, d), v_map),
            ],
            out_specs=pl.BlockSpec((pl.Squeezed(), tq, D), o_map),
            scratch_shapes=[
                pltpu.VMEM((H, tq, 1), jnp.float32),   # running max  m
                pltpu.VMEM((H, tq, 1), jnp.float32),   # running sum  l
                pltpu.VMEM((H, tq, d), jnp.float32),   # output accumulator
            ],
        ),
        compiler_params=pltpu.CompilerParams(
            dimension_semantics=("parallel", "arbitrary"),
            vmem_limit_bytes=vmem_limit),
    )(qkv_heads, qkv_heads, qkv_heads)


# ----------------------------------------------------------------------------
# Module wrapper (mirrors SelfAttentionFlashMHA.forward)
# ----------------------------------------------------------------------------
def self_attention_flash_mha(x, w_qkv, b_qkv=None, *, num_heads, causal=False,
                             attn_weight=False, compute_dtype=None,
                             q_block=None, kv_block=None):
    """x: (B, S, D) with D = num_heads * head_dim.
    w_qkv: (3D, D) PyTorch-layout Linear weight; b_qkv: (3D,) or None."""
    B, S, D = x.shape
    H = num_heads
    assert D % H == 0, "hidden_dim must be divisible by num_heads"
    d = D // H
    assert d % 8 == 0 and d <= 128, "head_dim must be <= 128 and divisible by 8"

    if b_qkv is None:
        b_qkv = jnp.zeros((3 * D,), x.dtype)

    # Fold the 1/sqrt(head_dim) softmax scale into the Q rows of Wqkv / bias:
    # one tiny elementwise op on the weight instead of per-KV-step VPU work.
    scale = 1.0 / math.sqrt(d)
    w = jnp.concatenate([w_qkv[:D] * scale, w_qkv[D:]], axis=0)
    b = jnp.concatenate([b_qkv[:D] * scale, b_qkv[D:]], axis=0)

    if compute_dtype is not None:                      # e.g. jnp.bfloat16
        x = x.astype(compute_dtype)
        w = w.astype(compute_dtype)
        b = b.astype(compute_dtype)

    # Wqkv projection, emitted directly in the head-major (B, 3H, S, d)
    # layout consumed by the attention kernel (no HBM relayout in between).
    qkv_heads = qkv_projection(x, w, b.reshape(1, -1), num_heads=H)

    out = flash_attention(qkv_heads, num_heads=H, causal=causal,
                          q_block=q_block, kv_block=kv_block)

    if attn_weight:
        # Debug path in plain JAX.  NOTE: mirrors the PyTorch module, which
        # does NOT apply the causal mask inside this torch.no_grad() branch.
        q = qkv_heads[:, 0:H].astype(jnp.float32)      # already 1/sqrt(d)-scaled
        k = qkv_heads[:, H:2 * H].astype(jnp.float32)
        attn = jax.nn.softmax(jnp.einsum("bhqd,bhkd->bhqk", q, k), axis=-1)
        return out, attn
    return out


# ----------------------------------------------------------------------------
# Pure-JAX reference for sanity checks
# ----------------------------------------------------------------------------
def reference(x, w_qkv, b_qkv, *, num_heads, causal=False):
    B, S, D = x.shape
    H = num_heads
    d = D // H
    x32 = x.astype(jnp.float32)
    w32 = w_qkv.astype(jnp.float32)
    b32 = b_qkv.astype(jnp.float32)
    qkv = (x32.reshape(B * S, D) @ w32.T + b32).reshape(B, S, 3, H, d)
    q = jnp.transpose(qkv[:, :, 0], (0, 2, 1, 3))
    k = jnp.transpose(qkv[:, :, 1], (0, 2, 1, 3))
    v = jnp.transpose(qkv[:, :, 2], (0, 2, 1, 3))
    s = jnp.einsum("bhqd,bhkd->bhqk", q, k) / math.sqrt(d)
    if causal:
        mask = jnp.tril(jnp.ones((S, S), bool))
        s = jnp.where(mask, s, -jnp.inf)
    p = jax.nn.softmax(s, axis=-1)
    ctx = jnp.einsum("bhqk,bhkd->bhqd", p, v)
    return jnp.transpose(ctx, (0, 2, 1, 3)).reshape(B, S, D)


if __name__ == "__main__":
    key = jax.random.PRNGKey(0)
    k1, k2, k3, k4, k5, k6 = jax.random.split(key, 6)

    # ---- 1) standalone projection check: exercises the K-tiled accumulate
    #         path and the head-major epilogue scatter -----------------------
    Bp, Sp, Dp, Hp = 2, 16, 256, 4
    dp = Dp // Hp
    xp = jax.random.normal(k1, (Bp, Sp, Dp), dtype=jnp.float32)
    wp = jax.random.normal(k2, (3 * Dp, Dp), dtype=jnp.float32) / math.sqrt(Dp)
    bp = jax.random.normal(k3, (3 * Dp,), dtype=jnp.float32) * 0.01
    got = jax.block_until_ready(
        qkv_projection(xp, wp, bp.reshape(1, -1), num_heads=Hp, tk=128))
    want = (jnp.einsum("bsk,nk->bsn", xp, wp) + bp)
    want = want.reshape(Bp, Sp, 3 * Hp, dp).transpose(0, 2, 1, 3)
    assert got.shape == (Bp, 3 * Hp, Sp, dp)
    assert jnp.allclose(got, want, atol=2e-2, rtol=2e-2), "qkv projection"

    # ---- 2) full module, small config: hidden 32, 4 heads (head_dim 8) -----
    B, S, D, H = 2, 16, 32, 4
    x = jax.random.normal(k4, (B, S, D), dtype=jnp.float32)
    w_qkv = jax.random.normal(k5, (3 * D, D), dtype=jnp.float32) / math.sqrt(D)
    b_qkv = jax.random.normal(k6, (3 * D,), dtype=jnp.float32) * 0.01

    for causal in (False, True):
        fwd = jax.jit(functools.partial(
            self_attention_flash_mha, num_heads=H, causal=causal))
        out = jax.block_until_ready(fwd(x, w_qkv, b_qkv))
        ref = reference(x, w_qkv, b_qkv, num_heads=H, causal=causal)
        assert out.shape == (B, S, D)
        assert jnp.allclose(out, ref, atol=2e-2, rtol=2e-2), f"causal={causal}"

    # ---- 3) multi-block online softmax + causal DMA clamp (S=32; the 16x8
    #         tiling has fully masked rows inside straddling blocks) ---------
    B2, S2 = 2, 32
    x2 = jax.random.normal(k4, (B2, S2, D), dtype=jnp.float32)
    for (bq_, bkv_) in ((8, 8), (16, 8)):
        for causal in (False, True):
            fwd = jax.jit(functools.partial(
                self_attention_flash_mha, num_heads=H, causal=causal,
                q_block=bq_, kv_block=bkv_))
            out = jax.block_until_ready(fwd(x2, w_qkv, b_qkv))
            ref = reference(x2, w_qkv, b_qkv, num_heads=H, causal=causal)
            assert jnp.allclose(out, ref, atol=2e-2, rtol=2e-2), \
                f"tq={bq_} tkv={bkv_} causal={causal}"

    # ---- 4) bf16 end-to-end (halved DMA bytes, full-rate MXU) --------------
    fwd_bf16 = jax.jit(functools.partial(
        self_attention_flash_mha, num_heads=H, causal=True,
        compute_dtype=jnp.bfloat16))
    out_bf16 = jax.block_until_ready(fwd_bf16(x, w_qkv, b_qkv))
    ref_bf16 = reference(x.astype(jnp.bfloat16), w_qkv.astype(jnp.bfloat16),
                         b_qkv.astype(jnp.bfloat16), num_heads=H, causal=True)
    assert out_bf16.dtype == jnp.bfloat16
    assert jnp.allclose(out_bf16.astype(jnp.float32), ref_bf16,
                        atol=8e-2, rtol=8e-2), "bf16"

    # ---- 5) attn_weight debug branch (plain JAX, mirrors the torch module) -
    out_w, attn = self_attention_flash_mha(
        x, w_qkv, b_qkv, num_heads=H, causal=False, attn_weight=True)
    assert attn.shape == (B, H, S, S)
    assert jnp.allclose(jnp.sum(attn, axis=-1), jnp.ones((B, H, S)), atol=1e-3)

    print("KERNEL_OK")
</pallas_src>

<mosaic_0001>
module attributes {stable_mosaic.version = 11 : i64} {
  func.func @_qkv_proj_kernel(%arg0: i32, %arg1: i32, %arg2: i32, %arg3: memref<1x16x128xf32, #tpu.memory_space<vmem>>, %arg4: memref<768x128xf32, #tpu.memory_space<vmem>>, %arg5: memref<1x768xf32, #tpu.memory_space<vmem>>, %arg6: memref<1x12x16x64xf32, #tpu.memory_space<vmem>>, %arg7: memref<16x768xf32, #tpu.memory_space<vmem>>) attributes {dimension_semantics = [#tpu.dimension_semantics<parallel>, #tpu.dimension_semantics<parallel>, #tpu.dimension_semantics<arbitrary>], iteration_bounds = array<i64: 2, 1, 2>, scalar_prefetch = 0 : i64, scratch_operands = 1 : i64, tpu.core_type = #tpu.core_type<tc>, window_params = [{transform_indices = @transform_0, window_bounds = array<i64: 1, 16, 128>}, {transform_indices = @transform_1, window_bounds = array<i64: 768, 128>}, {pipeline_mode = #tpu.pipeline_mode<synchronous>, transform_indices = @transform_2, window_bounds = array<i64: 1, 768>}, {transform_indices = @transform_3, window_bounds = array<i64: 1, 12, 16, 64>}]} {
    %c0_i32 = arith.constant 0 : i32
    %0 = arith.cmpi eq, %arg2, %c0_i32 : i32
    %1 = arith.extui %0 : i1 to i32
    %c0_i32_0 = arith.constant 0 : i32
    %2 = arith.cmpi ne, %1, %c0_i32_0 : i32
    scf.if %2 {
      %cst_10 = arith.constant 0.000000e+00 : f32
      %13 = vector.broadcast %cst_10 : f32 to vector<16x768xf32>
      %c0_11 = arith.constant 0 : index
      %c0_12 = arith.constant 0 : index
      %14 = vector.load %arg7[%c0_11, %c0_12] : memref<16x768xf32, #tpu.memory_space<vmem>>, vector<16x768xf32>
      tpu.vector_store %arg7[%c0_11, %c0_12], %13 {strides = array<i32>} : memref<16x768xf32, #tpu.memory_space<vmem>>, vector<16x768xf32>,
    } else {
    }
    %c0 = arith.constant 0 : index
    %c0_1 = arith.constant 0 : index
    %3 = vector.load %arg7[%c0, %c0_1] : memref<16x768xf32, #tpu.memory_space<vmem>>, vector<16x768xf32>
    %c0_2 = arith.constant 0 : index
    %c0_3 = arith.constant 0 : index
    %c0_4 = arith.constant 0 : index
    %4 = vector.load %arg3[%c0_2, %c0_3, %c0_4] : memref<1x16x128xf32, #tpu.memory_space<vmem>>, vector<1x16x128xf32>
    %5 = vector.shape_cast %4 : vector<1x16x128xf32> to vector<16x128xf32>
    %c0_5 = arith.constant 0 : index
    %c0_6 = arith.constant 0 : index
    %6 = vector.load %arg4[%c0_5, %c0_6] : memref<768x128xf32, #tpu.memory_space<vmem>>, vector<768x128xf32>
    %cst = arith.constant dense<0.000000e+00> : vector<16x768xf32>
    %7 = tpu.matmul %5, %6, %cst {dimension_numbers = #tpu.dot_dimension_numbers<[1], [1], [0], [0], [0, 0, 1, 0], [], []>} : vector<16x128xf32>, vector<768x128xf32>, vector<16x768xf32> -> vector<16x768xf32>
    %8 = arith.addf %3, %7 : vector<16x768xf32>
    %c0_7 = arith.constant 0 : index
    %c0_8 = arith.constant 0 : index
    %9 = vector.load %arg7[%c0_7, %c0_8] : memref<16x768xf32, #tpu.memory_space<vmem>>, vector<16x768xf32>
    tpu.vector_store %arg7[%c0_7, %c0_8], %8 {strides = array<i32>} : memref<16x768xf32, #tpu.memory_space<vmem>>, vector<16x768xf32>,
    %c1_i32 = arith.constant 1 : i32
    %10 = arith.cmpi eq, %arg2, %c1_i32 : i32
    %11 = arith.extui %10 : i1 to i32
    %c0_i32_9 = arith.constant 0 : i32
    %12 = arith.cmpi ne, %11, %c0_i32_9 : i32
    scf.if %12 {
      %c0_10 = arith.constant 0 : index
      %c0_11 = arith.constant 0 : index
      %13 = vector.load %arg7[%c0_10, %c0_11] : memref<16x768xf32, #tpu.memory_space<vmem>>, vector<16x768xf32>
      %c0_12 = arith.constant 0 : index
      %c0_13 = arith.constant 0 : index
      %14 = vector.load %arg5[%c0_12, %c0_13] : memref<1x768xf32, #tpu.memory_space<vmem>>, vector<1x768xf32>
      %15 = vector.broadcast %14 : vector<1x768xf32> to vector<16x768xf32>
      %16 = arith.addf %13, %15 : vector<16x768xf32>
      %17 = vector.extract_strided_slice %16 {offsets = [0, 0], sizes = [16, 64], strides = [1, 1]} : vector<16x768xf32> to vector<16x64xf32>
      %c0_14 = arith.constant 0 : index
      %c0_15 = arith.constant 0 : index
      %c0_16 = arith.constant 0 : index
      %c0_17 = arith.constant 0 : index
      %18 = vector.load %arg6[%c0_14, %c0_15, %c0_16, %c0_17] : memref<1x12x16x64xf32, #tpu.memory_space<vmem>>, vector<1x1x16x64xf32>
      %19 = vector.shape_cast %18 : vector<1x1x16x64xf32> to vector<16x64xf32>
      %20 = vector.shape_cast %17 : vector<16x64xf32> to vector<1x1x16x64xf32>
      tpu.vector_store %arg6[%c0_14, %c0_15, %c0_16, %c0_17], %20 {strides = array<i32>} : memref<1x12x16x64xf32, #tpu.memory_space<vmem>>, vector<1x1x16x64xf32>,
      %21 = vector.extract_strided_slice %16 {offsets = [0, 64], sizes = [16, 64], strides = [1, 1]} : vector<16x768xf32> to vector<16x64xf32>
      %c0_18 = arith.constant 0 : index
      %c1 = arith.constant 1 : index
      %c0_19 = arith.constant 0 : index
      %c0_20 = arith.constant 0 : index
      %22 = vector.load %arg6[%c0_18, %c1, %c0_19, %c0_20] : memref<1x12x16x64xf32, #tpu.memory_space<vmem>>, vector<1x1x16x64xf32>
      %23 = vector.shape_cast %22 : vector<1x1x16x64xf32> to vector<16x64xf32>
      %24 = vector.shape_cast %21 : vector<16x64xf32> to vector<1x1x16x64xf32>
      tpu.vector_store %arg6[%c0_18, %c1, %c0_19, %c0_20], %24 {strides = array<i32>} : memref<1x12x16x64xf32, #tpu.memory_space<vmem>>, vector<1x1x16x64xf32>,
      %25 = vector.extract_strided_slice %16 {offsets = [0, 128], sizes = [16, 64], strides = [1, 1]} : vector<16x768xf32> to vector<16x64xf32>
      %c0_21 = arith.constant 0 : index
      %c2 = arith.constant 2 : index
      %c0_22 = arith.constant 0 : index
      %c0_23 = arith.constant 0 : index
      %26 = vector.load %arg6[%c0_21, %c2, %c0_22, %c0_23] : memref<1x12x16x64xf32, #tpu.memory_space<vmem>>, vector<1x1x16x64xf32>
      %27 = vector.shape_cast %26 : vector<1x1x16x64xf32> to vector<16x64xf32>
      %28 = vector.shape_cast %25 : vector<16x64xf32> to vector<1x1x16x64xf32>
      tpu.vector_store %arg6[%c0_21, %c2, %c0_22, %c0_23], %28 {strides = array<i32>} : memref<1x12x16x64xf32, #tpu.memory_space<vmem>>, vector<1x1x16x64xf32>,
      %29 = vector.extract_strided_slice %16 {offsets = [0, 192], sizes = [16, 64], strides = [1, 1]} : vector<16x768xf32> to vector<16x64xf32>
      %c0_24 = arith.constant 0 : index
      %c3 = arith.constant 3 : index
      %c0_25 = arith.constant 0 : index
      %c0_26 = arith.constant 0 : index
      %30 = vector.load %arg6[%c0_24, %c3, %c0_25, %c0_26] : memref<1x12x16x64xf32, #tpu.memory_space<vmem>>, vector<1x1x16x64xf32>
      %31 = vector.shape_cast %30 : vector<1x1x16x64xf32> to vector<16x64xf32>
      %32 = vector.shape_cast %29 : vector<16x64xf32> to vector<1x1x16x64xf32>
      tpu.vector_store %arg6[%c0_24, %c3, %c0_25, %c0_26], %32 {strides = array<i32>} : memref<1x12x16x64xf32, #tpu.memory_space<vmem>>, vector<1x1x16x64xf32>,
      %33 = vector.extract_strided_slice %16 {offsets = [0, 256], sizes = [16, 64], strides = [1, 1]} : vector<16x768xf32> to vector<16x64xf32>
      %c0_27 = arith.constant 0 : index
      %c4 = arith.constant 4 : index
      %c0_28 = arith.constant 0 : index
      %c0_29 = arith.constant 0 : index
      %34 = vector.load %arg6[%c0_27, %c4, %c0_28, %c0_29] : memref<1x12x16x64xf32, #tpu.memory_space<vmem>>, vector<1x1x16x64xf32>
      %35 = vector.shape_cast %34 : vector<1x1x16x64xf32> to vector<16x64xf32>
      %36 = vector.shape_cast %33 : vector<16x64xf32> to vector<1x1x16x64xf32>
      tpu.vector_store %arg6[%c0_27, %c4, %c0_28, %c0_29], %36 {strides = array<i32>} : memref<1x12x16x64xf32, #tpu.memory_space<vmem>>, vector<1x1x16x64xf32>,
      %37 = vector.extract_strided_slice %16 {offsets = [0, 320], sizes = [16, 64], strides = [1, 1]} : vector<16x768xf32> to vector<16x64xf32>
      %c0_30 = arith.constant 0 : index
      %c5 = arith.constant 5 : index
      %c0_31 = arith.constant 0 : index
      %c0_32 = arith.constant 0 : index
      %38 = vector.load %arg6[%c0_30, %c5, %c0_31, %c0_32] : memref<1x12x16x64xf32, #tpu.memory_space<vmem>>, vector<1x1x16x64xf32>
      %39 = vector.shape_cast %38 : vector<1x1x16x64xf32> to vector<16x64xf32>
      %40 = vector.shape_cast %37 : vector<16x64xf32> to vector<1x1x16x64xf32>
      tpu.vector_store %arg6[%c0_30, %c5, %c0_31, %c0_32], %40 {strides = array<i32>} : memref<1x12x16x64xf32, #tpu.memory_space<vmem>>, vector<1x1x16x64xf32>,
      %41 = vector.extract_strided_slice %16 {offsets = [0, 384], sizes = [16, 64], strides = [1, 1]} : vector<16x768xf32> to vector<16x64xf32>
      %c0_33 = arith.constant 0 : index
      %c6 = arith.constant 6 : index
      %c0_34 = arith.constant 0 : index
      %c0_35 = arith.constant 0 : index
      %42 = vector.load %arg6[%c0_33, %c6, %c0_34, %c0_35] : memref<1x12x16x64xf32, #tpu.memory_space<vmem>>, vector<1x1x16x64xf32>
      %43 = vector.shape_cast %42 : vector<1x1x16x64xf32> to vector<16x64xf32>
      %44 = vector.shape_cast %41 : vector<16x64xf32> to vector<1x1x16x64xf32>
      tpu.vector_store %arg6[%c0_33, %c6, %c0_34, %c0_35], %44 {strides = array<i32>} : memref<1x12x16x64xf32, #tpu.memory_space<vmem>>, vector<1x1x16x64xf32>,
      %45 = vector.extract_strided_slice %16 {offsets = [0, 448], sizes = [16, 64], strides = [1, 1]} : vector<16x768xf32> to vector<16x64xf32>
      %c0_36 = arith.constant 0 : index
      %c7 = arith.constant 7 : index
      %c0_37 = arith.constant 0 : index
      %c0_38 = arith.constant 0 : index
      %46 = vector.load %arg6[%c0_36, %c7, %c0_37, %c0_38] : memref<1x12x16x64xf32, #tpu.memory_space<vmem>>, vector<1x1x16x64xf32>
      %47 = vector.shape_cast %46 : vector<1x1x16x64xf32> to vector<16x64xf32>
      %48 = vector.shape_cast %45 : vector<16x64xf32> to vector<1x1x16x64xf32>
      tpu.vector_store %arg6[%c0_36, %c7, %c0_37, %c0_38], %48 {strides = array<i32>} : memref<1x12x16x64xf32, #tpu.memory_space<vmem>>, vector<1x1x16x64xf32>,
      %49 = vector.extract_strided_slice %16 {offsets = [0, 512], sizes = [16, 64], strides = [1, 1]} : vector<16x768xf32> to vector<16x64xf32>
      %c0_39 = arith.constant 0 : index
      %c8 = arith.constant 8 : index
      %c0_40 = arith.constant 0 : index
      %c0_41 = arith.constant 0 : index
      %50 = vector.load %arg6[%c0_39, %c8, %c0_40, %c0_41] : memref<1x12x16x64xf32, #tpu.memory_space<vmem>>, vector<1x1x16x64xf32>
      %51 = vector.shape_cast %50 : vector<1x1x16x64xf32> to vector<16x64xf32>
      %52 = vector.shape_cast %49 : vector<16x64xf32> to vector<1x1x16x64xf32>
      tpu.vector_store %arg6[%c0_39, %c8, %c0_40, %c0_41], %52 {strides = array<i32>} : memref<1x12x16x64xf32, #tpu.memory_space<vmem>>, vector<1x1x16x64xf32>,
      %53 = vector.extract_strided_slice %16 {offsets = [0, 576], sizes = [16, 64], strides = [1, 1]} : vector<16x768xf32> to vector<16x64xf32>
      %c0_42 = arith.constant 0 : index
      %c9 = arith.constant 9 : index
      %c0_43 = arith.constant 0 : index
      %c0_44 = arith.constant 0 : index
      %54 = vector.load %arg6[%c0_42, %c9, %c0_43, %c0_44] : memref<1x12x16x64xf32, #tpu.memory_space<vmem>>, vector<1x1x16x64xf32>
      %55 = vector.shape_cast %54 : vector<1x1x16x64xf32> to vector<16x64xf32>
      %56 = vector.shape_cast %53 : vector<16x64xf32> to vector<1x1x16x64xf32>
      tpu.vector_store %arg6[%c0_42, %c9, %c0_43, %c0_44], %56 {strides = array<i32>} : memref<1x12x16x64xf32, #tpu.memory_space<vmem>>, vector<1x1x16x64xf32>,
      %57 = vector.extract_strided_slice %16 {offsets = [0, 640], sizes = [16, 64], strides = [1, 1]} : vector<16x768xf32> to vector<16x64xf32>
      %c0_45 = arith.constant 0 : index
      %c10 = arith.constant 10 : index
      %c0_46 = arith.constant 0 : index
      %c0_47 = arith.constant 0 : index
      %58 = vector.load %arg6[%c0_45, %c10, %c0_46, %c0_47] : memref<1x12x16x64xf32, #tpu.memory_space<vmem>>, vector<1x1x16x64xf32>
      %59 = vector.shape_cast %58 : vector<1x1x16x64xf32> to vector<16x64xf32>
      %60 = vector.shape_cast %57 : vector<16x64xf32> to vector<1x1x16x64xf32>
      tpu.vector_store %arg6[%c0_45, %c10, %c0_46, %c0_47], %60 {strides = array<i32>} : memref<1x12x16x64xf32, #tpu.memory_space<vmem>>, vector<1x1x16x64xf32>,
      %61 = vector.extract_strided_slice %16 {offsets = [0, 704], sizes = [16, 64], strides = [1, 1]} : vector<16x768xf32> to vector<16x64xf32>
      %c0_48 = arith.constant 0 : index
      %c11 = arith.constant 11 : index
      %c0_49 = arith.constant 0 : index
      %c0_50 = arith.constant 0 : index
      %62 = vector.load %arg6[%c0_48, %c11, %c0_49, %c0_50] : memref<1x12x16x64xf32, #tpu.memory_space<vmem>>, vector<1x1x16x64xf32>
      %63 = vector.shape_cast %62 : vector<1x1x16x64xf32> to vector<16x64xf32>
      %64 = vector.shape_cast %61 : vector<16x64xf32> to vector<1x1x16x64xf32>
      tpu.vector_store %arg6[%c0_48, %c11, %c0_49, %c0_50], %64 {strides = array<i32>} : memref<1x12x16x64xf32, #tpu.memory_space<vmem>>, vector<1x1x16x64xf32>,
    } else {
    }
    return
  }
  func.func @transform_0(%arg0: i32, %arg1: i32, %arg2: i32) -> (i32, i32, i32) {
    %c0_i32 = arith.constant 0 : i32
    return %arg0, %arg1, %arg2 : i32, i32, i32
  }
  func.func @transform_1(%arg0: i32, %arg1: i32, %arg2: i32) -> (i32, i32) {
    %c0_i32 = arith.constant 0 : i32
    %c0_i32_0 = arith.constant 0 : i32
    return %c0_i32, %arg2 : i32, i32
  }
  func.func @transform_2(%arg0: i32, %arg1: i32, %arg2: i32) -> (i32, i32) {
    %c0_i32 = arith.constant 0 : i32
    %c0_i32_0 = arith.constant 0 : i32
    %c0_i32_1 = arith.constant 0 : i32
    return %c0_i32, %c0_i32_0 : i32, i32
  }
  func.func @transform_3(%arg0: i32, %arg1: i32, %arg2: i32) -> (i32, i32, i32, i32) {
    %c0_i32 = arith.constant 0 : i32
    %c0_i32_0 = arith.constant 0 : i32
    %c0_i32_1 = arith.constant 0 : i32
    return %arg0, %c0_i32, %arg1, %c0_i32_0 : i32, i32, i32, i32
  }
}

</mosaic_0001>

<llo_original>
// kernel: tpu_custom_call.1
$region0: #{tpu_custom_call.1}
  #allocation0 [shape = 'u32[]', space=smem, size = 0x4, offset = 0x4, fixed_abs, tag = 'smem constant byte address 0x4 - core index']
  #allocation1 [shape = 'u32[144,128]{1,0:T(1,128)}', space=vmem, size = 0x12000, scoped, tag = 'internal scratch']
  #allocation2 [shape = 'f32[16,768]{1,0:T(8,128)}', space=vmem, size = 0xc000, scoped, tag = 'scratch operand']
  %s0 = inlined_call_operand.hbm [shape: f32[2,16,256], index: 0, kind: input, shape index: {}]
  %s1 = inlined_call_operand.hbm [shape: f32[768,256], index: 1, kind: input, shape index: {}]
  %s2 = inlined_call_operand.hbm [shape: f32[1,768], index: 2, kind: input, shape index: {}]
  %s3 = inlined_call_operand.hbm [shape: f32[2,12,16,64], index: 3, kind: output, shape index: {}]
  %s4 = sld [smem:[#allocation0]]
  $region65: #{tpu_custom_call.1} parent=0
    _
  %s6 = ssub.s32 1, %s4
  %s7 = scalar_select 0, %s6, %s4
  $region1: #{tpu_custom_call.1} parent=0
    #allocation3 [shape = 'u8[16384]{0}', space=vmem, size = 0x4000, scoped, tag = 'input window, operand 0']
    #allocation4 [shape = 's32[2]{0}', space=sflag, size = 0x8, scoped, tag = 'scoped memory for tpu_custom_call.1']
    #allocation5 [shape = 's32[2]{0}', space=sflag, size = 0x8, scoped, tag = 'scoped memory for tpu_custom_call.1']
    #allocation6 [shape = 'u8[786432]{0}', space=vmem, size = 0xc0000, scoped, tag = 'input window, operand 1']
    #allocation7 [shape = 's32[2]{0}', space=sflag, size = 0x8, scoped, tag = 'scoped memory for tpu_custom_call.1']
    #allocation8 [shape = 'u8[3072]{0}', space=vmem, size = 0xc00, scoped, tag = 'input window, operand 2, single buffered']
    #allocation9 [shape = 'u8[196608]{0}', space=vmem, size = 0x30000, scoped, tag = 'output window, operand 0']
    %8 = vsyncpa [#allocation4], 0
    %s9 = scalar_lea.sflag [#allocation4], 1
    %10 = vsyncpa %s9, 0
    %11 = vsyncpa [#allocation7], 0
    %s12 = scalar_lea.sflag [#allocation7], 1
    %13 = vsyncpa %s12, 0
    %14 = vsyncpa [#allocation5], 0
    %s15 = scalar_lea.sflag [#allocation5], 1
    %16 = vsyncpa %s15, 0
    loop: start=0, step=1, limit=6
    $region2: #{tpu_custom_call.1} parent=1 // loop_pre_header
      _
    $region3: #{tpu_custom_call.1} parent=1 // loop_header
      %s18 = sphi 0, %s22
      %p19 = scmp.ge.s32.totalorder %s18, 6
      %s25 = sphi 0, %s44
      %s26 = sphi 0, %s40
      %s27 = sphi 0, %s36
      %s28 = sphi 0, %s25
      %s29 = sphi 0, %s26
      %s30 = sphi 0, %s27
      %s31 = sphi 0, %s28
      %s32 = sphi 0, %s29
      %s33 = sphi 0, %s30
      %s51 = sphi 0, %s53
      %s54 = sphi 0, %s51
      %s55 = sphi 0, %s54
      %s71 = sphi 0, %s55
      %s77 = sphi 0, %s79
      %s80 = sphi 0, %s77
      %s81 = sphi 0, %s80
      %s97 = sphi 0, %s81
      %s101 = sphi 0, %s101
      %s103 = sphi 0, %s101
      %s104 = sphi 0, %s103
      %s118 = sphi 0, %s104
      %s126 = sphi 0, %s128
      %s129 = sphi 0, %s126
      %s130 = sphi 0, %s129
      %s146 = sphi 0, %s130
    $region4: #{tpu_custom_call.1} parent=1 // loop_header_branch
      %21 = sbr.rel (%p19) target = $region8
    $region5: #{tpu_custom_call.1} parent=1 // loop_body
      %s23 = ssub.s32 %s18, 1
      %s24 = ssub.s32 %s18, 2
      %s34 = sadd.s32 1, %s27
      %p35 = scmp.ge.s32.totalorder %s34, 2
      %s36 = scalar_select %p35, 0, %s34
      %s37 = sadd.s32 1, %s26
      %s38 = scalar_select %p35, %s37, %s26
      %p39 = scmp.ge.s32.totalorder %s38, 1
      %s40 = scalar_select %p39, 0, %s38
      %s41 = sadd.s32 1, %s25
      %s42 = scalar_select %p39, %s41, %s25
      %p43 = scmp.ge.s32.totalorder %s42, 2
      %s44 = scalar_select %p43, 0, %s42
      %s45 = ssub.s32 %s25, %s44
      %s46 = ssub.s32 %s26, %s40
      %s47 = sor.u32 %s45, %s46
      %s48 = ssub.s32 %s27, %s36
      %s49 = sor.u32 %s47, %s48
      %p50 = scmp.eq.s32.totalorder %s49, 0
      %s52 = sadd.s32 %s51, 1
      %s53 = scalar_select %p50, %s51, %s52
      %p56 = pneg %p50
      %p57 = scmp.eq.s32.totalorder %s18, 3
      %p58 = por %p56, %p57
      %p59 = scmp.ne.s32.totalorder %s51, %s54
      %p60 = scmp.eq.s32.totalorder %s18, 0
      %p61 = por %p59, %p60
      %p62 = scmp.ne.s32.totalorder %s51, %s54
      %p63 = scmp.eq.s32.totalorder %s23, 3
      %p64 = por %p62, %p63
      %p65 = scmp.ne.s32.totalorder %s54, %s55
      %p66 = scmp.eq.s32.totalorder %s23, 0
      %p67 = por %p65, %p66
      %p68 = scmp.ne.s32.totalorder %s54, %s55
      %p69 = scmp.eq.s32.totalorder %s24, 3
      %p70 = por %p68, %p69
      %p72 = scmp.ne.s32.totalorder %s55, %s71
      %p73 = scmp.eq.s32.totalorder %s24, 0
      %p74 = por %p72, %p73
      %s75 = ssub.s32 %s27, %s36
      %p76 = scmp.eq.s32.totalorder %s75, 0
      %s78 = sadd.s32 %s77, 1
      %s79 = scalar_select %p76, %s77, %s78
      %p82 = pneg %p76
      %p83 = scmp.eq.s32.totalorder %s18, 3
      %p84 = por %p82, %p83
      %p85 = scmp.ne.s32.totalorder %s77, %s80
      %p86 = scmp.eq.s32.totalorder %s18, 0
      %p87 = por %p85, %p86
      %p88 = scmp.ne.s32.totalorder %s77, %s80
      %p89 = scmp.eq.s32.totalorder %s23, 3
      %p90 = por %p88, %p89
      %p91 = scmp.ne.s32.totalorder %s80, %s81
      %p92 = scmp.eq.s32.totalorder %s23, 0
      %p93 = por %p91, %p92
      %p94 = scmp.ne.s32.totalorder %s80, %s81
      %p95 = scmp.eq.s32.totalorder %s24, 3
      %p96 = por %p94, %p95
      %p98 = scmp.ne.s32.totalorder %s81, %s97
      %p99 = scmp.eq.s32.totalorder %s24, 0
      %p100 = por %p98, %p99
      %s102 = sadd.s32 %s101, 1
      %p105 = scmp.eq.s32.totalorder %s18, 3
      %p106 = scmp.ne.s32.totalorder %s101, %s103
      %p107 = scmp.eq.s32.totalorder %s18, 0
      %p108 = por %p106, %p107
      %p109 = scmp.ne.s32.totalorder %s101, %s103
      %p110 = scmp.eq.s32.totalorder %s23, 3
      %p111 = por %p109, %p110
      %p112 = scmp.ne.s32.totalorder %s103, %s104
      %p113 = scmp.eq.s32.totalorder %s23, 0
      %p114 = por %p112, %p113
      %p115 = scmp.ne.s32.totalorder %s103, %s104
      %p116 = scmp.eq.s32.totalorder %s24, 3
      %p117 = por %p115, %p116
      %p119 = scmp.ne.s32.totalorder %s104, %s118
      %p120 = scmp.eq.s32.totalorder %s24, 0
      %p121 = por %p119, %p120
      %s122 = ssub.s32 %s25, %s44
      %s123 = ssub.s32 %s26, %s40
      %s124 = sor.u32 %s122, %s123
      %p125 = scmp.eq.s32.totalorder %s124, 0
      %s127 = sadd.s32 %s126, 1
      %s128 = scalar_select %p125, %s126, %s127
      %p131 = pneg %p125
      %p132 = scmp.eq.s32.totalorder %s18, 3
      %p133 = por %p131, %p132
      %p134 = scmp.ne.s32.totalorder %s126, %s129
      %p135 = scmp.eq.s32.totalorder %s18, 0
      %p136 = por %p134, %p135
      %p137 = scmp.ne.s32.totalorder %s126, %s129
      %p138 = scmp.eq.s32.totalorder %s23, 3
      %p139 = por %p137, %p138
      %p140 = scmp.ne.s32.totalorder %s129, %s130
      %p141 = scmp.eq.s32.totalorder %s23, 0
      %p142 = por %p140, %p141
      %p143 = scmp.ne.s32.totalorder %s129, %s130
      %p144 = scmp.eq.s32.totalorder %s24, 3
      %p145 = por %p143, %p144
      %p147 = scmp.ne.s32.totalorder %s130, %s146
      %p148 = scmp.eq.s32.totalorder %s24, 0
      %p149 = por %p147, %p148
      %p150 = scmp.le.s32.totalorder 1, %s18
      %p151 = scmp.lt.s32.totalorder %s18, 5
      %p152 = pnand %p150, %p151
      %p153 = pneg %p152
      // Predicated region
      $region9: #{tpu_custom_call.1} parent=5 // pred_check
        _
      $region10: #{tpu_custom_call.1} parent=5 // pred_check_branch
        %155 = sbr.rel (%p152) target = $region12
      $region11: #{tpu_custom_call.1} parent=5 // pred_region
        %s156 = ssub.s32 %s18, 1
        // Predicated region
        $region13: #{tpu_custom_call.1} parent=11 // pred_check
          %p157 = pneg %p114
        $region14: #{tpu_custom_call.1} parent=11 // pred_check_branch
          %159 = sbr.rel (%p157) target = $region16
        $region15: #{tpu_custom_call.1} parent=11 // pred_region
          %s161 = ssub.s32 96, 96
          %162 = vsyncadd [#allocation7], %s161
          %s164 = sshll.u32 [#allocation8], 4
          %s165 = int_to_ptr.vmem [resolvable:$true] %s164
          %167 = dma.hbm_to_vmem [thread:$0]  %s2, 96, %s165, [#allocation7]
        $region16: #{tpu_custom_call.1} parent=11 // pred_fallthru
          _
      $region12: #{tpu_custom_call.1} parent=5 // pred_fallthru
        _
      %p168 = scmp.lt.s32.totalorder %s18, 4
      // Predicated region
      $region17: #{tpu_custom_call.1} parent=5 // pred_check
        %p169 = pneg %p168
      $region18: #{tpu_custom_call.1} parent=5 // pred_check_branch
        %171 = sbr.rel (%p169) target = $region20
      $region19: #{tpu_custom_call.1} parent=5 // pred_region
        // Predicated region
        $region21: #{tpu_custom_call.1} parent=19 // pred_check
          %p172 = pneg %p61
        $region22: #{tpu_custom_call.1} parent=19 // pred_check_branch
          %174 = sbr.rel (%p172) target = $region24
        $region23: #{tpu_custom_call.1} parent=19 // pred_region
          %s175 = sand.u32 %s51, 1
          %s176 = scalar_lea.sflag [#allocation4], %s175
          %s177 = sand.u32 %s51, 1
          %s178 = smul.addr %s177, 16
          %s179 = scalar_lea.vmem [#allocation3], %s178
          %s180 = smul.u32 2, %s26
          %s182 = ssub.s32 256, 256
          %183 = vsyncadd %s176, %s182
          %s184 = smul.addr %s180, 2
          %s185 = sadd.s32 %s27, %s184
          %s186 = smul.addr %s25, 4
          %s187 = sadd.s32 %s185, %s186
          %s188 = smul.addr %s187, 128
          %s189 = scalar_lea.hbm %s0, %s188
          %s190 = sshll.u32 %s179, 4
          %s191 = int_to_ptr.vmem [resolvable:$true] %s190
          %196 = dma.hbm_to_vmem [thread:$0]  %s189, 256, %s191, %s176, 256, 128, 8
        $region24: #{tpu_custom_call.1} parent=19 // pred_fallthru
          _
        // Predicated region
        $region25: #{tpu_custom_call.1} parent=19 // pred_check
          %p197 = pneg %p87
        $region26: #{tpu_custom_call.1} parent=19 // pred_check_branch
          %199 = sbr.rel (%p197) target = $region28
        $region27: #{tpu_custom_call.1} parent=19 // pred_region
          %s200 = sand.u32 %s18, 1
          %s201 = scalar_lea.sflag [#allocation7], %s200
          %s202 = sand.u32 %s77, 1
          %s203 = smul.addr %s202, 768
          %s204 = scalar_lea.vmem [#allocation6], %s203
          %s206 = ssub.s32 12288, 12288
          %207 = vsyncadd %s201, %s206
          %s208 = smul.addr %s27, 128
          %s209 = scalar_lea.hbm %s1, %s208
          %s210 = sshll.u32 %s204, 4
          %s211 = int_to_ptr.vmem [resolvable:$true] %s210
          %216 = dma.hbm_to_vmem [thread:$0]  %s209, 12288, %s211, %s201, 256, 128, 8
        $region28: #{tpu_custom_call.1} parent=19 // pred_fallthru
          _
      $region20: #{tpu_custom_call.1} parent=5 // pred_fallthru
        _
      %p217 = scmp.le.s32.totalorder 1, %s18
      %p218 = scmp.lt.s32.totalorder %s18, 5
      %p219 = pnand %p217, %p218
      %p220 = pneg %p219
      // Predicated region
      $region29: #{tpu_custom_call.1} parent=5 // pred_check
        _
      $region30: #{tpu_custom_call.1} parent=5 // pred_check_branch
        %222 = sbr.rel (%p219) target = $region32
      $region31: #{tpu_custom_call.1} parent=5 // pred_region
        %s223 = ssub.s32 %s18, 1
        %s224 = sand.u32 %s54, 1
        %s225 = scalar_lea.sflag [#allocation4], %s224
        %s226 = sand.u32 %s54, 1
        %s227 = smul.addr %s226, 16
        %s228 = scalar_lea.vmem [#allocation3], %s227
        // Predicated region
        $region33: #{tpu_custom_call.1} parent=31 // pred_check
          %p229 = pneg %p67
        $region34: #{tpu_custom_call.1} parent=31 // pred_check_branch
          %231 = sbr.rel (%p229) target = $region36
        $region35: #{tpu_custom_call.1} parent=31 // pred_region
          %232 = dma.done %s225, 256
        $region36: #{tpu_custom_call.1} parent=31 // pred_fallthru
          _
        %s233 = sand.u32 %s23, 1
        %s234 = scalar_lea.sflag [#allocation7], %s233
        %s235 = sand.u32 %s80, 1
        %s236 = smul.addr %s235, 768
        %s237 = scalar_lea.vmem [#allocation6], %s236
        // Predicated region
        $region37: #{tpu_custom_call.1} parent=31 // pred_check
          %p238 = pneg %p93
        $region38: #{tpu_custom_call.1} parent=31 // pred_check_branch
          %240 = sbr.rel (%p238) target = $region40
        $region39: #{tpu_custom_call.1} parent=31 // pred_region
          %241 = dma.done %s234, 12288
        $region40: #{tpu_custom_call.1} parent=31 // pred_fallthru
          _
        // Predicated region
        $region41: #{tpu_custom_call.1} parent=31 // pred_check
          %p242 = pneg %p114
        $region42: #{tpu_custom_call.1} parent=31 // pred_check_branch
          %244 = sbr.rel (%p242) target = $region44
        $region43: #{tpu_custom_call.1} parent=31 // pred_region
          %245 = dma.done [#allocation7], 96
        $region44: #{tpu_custom_call.1} parent=31 // pred_fallthru
          _
        %s246 = sand.u32 %s54, 1
        %s247 = scalar_lea.sflag [#allocation4], %s246
        %s248 = sand.u32 %s54, 1
        %s249 = smul.addr %s248, 16
        %s250 = scalar_lea.vmem [#allocation3], %s249
        %p251 = pneg %p67
        %p252 = pneg %p64
        %s253 = sand.u32 %s23, 1
        %s254 = scalar_lea.sflag [#allocation7], %s253
        %s255 = sand.u32 %s80, 1
        %s256 = smul.addr %s255, 768
        %s257 = scalar_lea.vmem [#allocation6], %s256
        %p258 = pneg %p93
        %p259 = pneg %p90
        %p260 = pneg %p114
        %p261 = pneg %p111
        %p262 = pneg %p142
        %p263 = pneg %p139
        %s264 = sand.u32 %s129, 1
        %s265 = scalar_lea.sflag [#allocation5], %s264
        %s266 = sand.u32 %s129, 1
        %s267 = smul.addr %s266, 192
        %s268 = scalar_lea.vmem [#allocation9], %s267
        %s269 = smul.u32 2, %s29
        %s270 = smul.u32 2, %s29
        %p271 = scmp.eq.s32.totalorder %s30, 0
        // Predicated region
        $region45: #{tpu_custom_call.1} parent=31 // pred_check
          %p272 = pneg %p271
        $region46: #{tpu_custom_call.1} parent=31 // pred_check_branch
          %274 = sbr.rel (%p272) target = $region48
        $region47: #{tpu_custom_call.1} parent=31 // pred_region
          %275 = vst [vmem:[#allocation2] sm:$0xff] 0.0
          %276 = vst [vmem:[#allocation2 + $0x8] sm:$0xff] 0.0
          %277 = vst [vmem:[#allocation2 + $0x10] sm:$0xff] 0.0
          %278 = vst [vmem:[#allocation2 + $0x18] sm:$0xff] 0.0
          %279 = vst [vmem:[#allocation2 + $0x20] sm:$0xff] 0.0
          %280 = vst [vmem:[#allocation2 + $0x28] sm:$0xff] 0.0
          %281 = vst [vmem:[#allocation2 + $0x30] sm:$0xff] 0.0
          %282 = vst [vmem:[#allocation2 + $0x38] sm:$0xff] 0.0
          %283 = vst [vmem:[#allocation2 + $0x40] sm:$0xff] 0.0
          %284 = vst [vmem:[#allocation2 + $0x48] sm:$0xff] 0.0
          %285 = vst [vmem:[#allocation2 + $0x50] sm:$0xff] 0.0
          %286 = vst [vmem:[#allocation2 + $0x58] sm:$0xff] 0.0
        $region48: #{tpu_custom_call.1} parent=31 // pred_fallthru
          _
        %v287 = vld [vmem:[#allocation2] sm:$0xff]
        %v288 = vld [vmem:[#allocation2 + $0x8] sm:$0xff]
        %v289 = vld [vmem:[#allocation2 + $0x10] sm:$0xff]
        %v290 = vld [vmem:[#allocation2 + $0x18] sm:$0xff]
        %v291 = vld [vmem:[#allocation2 + $0x20] sm:$0xff]
        %v292 = vld [vmem:[#allocation2 + $0x28] sm:$0xff]
        %v293 = vld [vmem:[#allocation2 + $0x30] sm:$0xff]
        %v294 = vld [vmem:[#allocation2 + $0x38] sm:$0xff]
        %v295 = vld [vmem:[#allocation2 + $0x40] sm:$0xff]
        %v296 = vld [vmem:[#allocation2 + $0x48] sm:$0xff]
        %v297 = vld [vmem:[#allocation2 + $0x50] sm:$0xff]
        %v298 = vld [vmem:[#allocation2 + $0x58] sm:$0xff]
        %v299 = vld [vmem:[%s228] sm:$0xff]
        %v300 = vld [vmem:[%s228 + $0x8] sm:$0xff]
        %v301 = vld [vmem:[%s237] sm:$0xff]
        %v302 = vld [vmem:[%s237 + $0x8] sm:$0xff]
        %v303 = vld [vmem:[%s237 + $0x10] sm:$0xff]
        %v304 = vld [vmem:[%s237 + $0x18] sm:$0xff]
        %v305 = vld [vmem:[%s237 + $0x20] sm:$0xff]
        %v306 = vld [vmem:[%s237 + $0x28] sm:$0xff]
        %v307 = vld [vmem:[%s237 + $0x30] sm:$0xff]
        %v308 = vld [vmem:[%s237 + $0x38] sm:$0xff]
        %v309 = vld [vmem:[%s237 + $0x40] sm:$0xff]
        %v310 = vld [vmem:[%s237 + $0x48] sm:$0xff]
        %v311 = vld [vmem:[%s237 + $0x50] sm:$0xff]
        %v312 = vld [vmem:[%s237 + $0x58] sm:$0xff]
        %v313 = vld [vmem:[%s237 + $0x60] sm:$0xff]
        %v314 = vld [vmem:[%s237 + $0x68] sm:$0xff]
        %v315 = vld [vmem:[%s237 + $0x70] sm:$0xff]
        %v316 = vld [vmem:[%s237 + $0x78] sm:$0xff]
        %v317 = vld [vmem:[%s237 + $0x80] sm:$0xff]
        %v318 = vld [vmem:[%s237 + $0x88] sm:$0xff]
        %v319 = vld [vmem:[%s237 + $0x90] sm:$0xff]
        %v320 = vld [vmem:[%s237 + $0x98] sm:$0xff]
        %v321 = vld [vmem:[%s237 + $0xa0] sm:$0xff]
        %v322 = vld [vmem:[%s237 + $0xa8] sm:$0xff]
        %v323 = vld [vmem:[%s237 + $0xb0] sm:$0xff]
        %v324 = vld [vmem:[%s237 + $0xb8] sm:$0xff]
        %v325 = vld [vmem:[%s237 + $0xc0] sm:$0xff]
        %v326 = vld [vmem:[%s237 + $0xc8] sm:$0xff]
        %v327 = vld [vmem:[%s237 + $0xd0] sm:$0xff]
        %v328 = vld [vmem:[%s237 + $0xd8] sm:$0xff]
        %v329 = vld [vmem:[%s237 + $0xe0] sm:$0xff]
        %v330 = vld [vmem:[%s237 + $0xe8] sm:$0xff]
        %v331 = vld [vmem:[%s237 + $0xf0] sm:$0xff]
        %v332 = vld [vmem:[%s237 + $0xf8] sm:$0xff]
        %v333 = vld [vmem:[%s237 + $0x100] sm:$0xff]
        %v334 = vld [vmem:[%s237 + $0x108] sm:$0xff]
        %v335 = vld [vmem:[%s237 + $0x110] sm:$0xff]
        %v336 = vld [vmem:[%s237 + $0x118] sm:$0xff]
        %v337 = vld [vmem:[%s237 + $0x120] sm:$0xff]
        %v338 = vld [vmem:[%s237 + $0x128] sm:$0xff]
        %v339 = vld [vmem:[%s237 + $0x130] sm:$0xff]
        %v340 = vld [vmem:[%s237 + $0x138] sm:$0xff]
        %v341 = vld [vmem:[%s237 + $0x140] sm:$0xff]
        %v342 = vld [vmem:[%s237 + $0x148] sm:$0xff]
        %v343 = vld [vmem:[%s237 + $0x150] sm:$0xff]
        %v344 = vld [vmem:[%s237 + $0x158] sm:$0xff]
        %v345 = vld [vmem:[%s237 + $0x160] sm:$0xff]
        %v346 = vld [vmem:[%s237 + $0x168] sm:$0xff]
        %v347 = vld [vmem:[%s237 + $0x170] sm:$0xff]
        %v348 = vld [vmem:[%s237 + $0x178] sm:$0xff]
        %v349 = vld [vmem:[%s237 + $0x180] sm:$0xff]
        %v350 = vld [vmem:[%s237 + $0x188] sm:$0xff]
        %v351 = vld [vmem:[%s237 + $0x190] sm:$0xff]
        %v352 = vld [vmem:[%s237 + $0x198] sm:$0xff]
        %v353 = vld [vmem:[%s237 + $0x1a0] sm:$0xff]
        %v354 = vld [vmem:[%s237 + $0x1a8] sm:$0xff]
        %v355 = vld [vmem:[%s237 + $0x1b0] sm:$0xff]
        %v356 = vld [vmem:[%s237 + $0x1b8] sm:$0xff]
        %v357 = vld [vmem:[%s237 + $0x1c0] sm:$0xff]
        %v358 = vld [vmem:[%s237 + $0x1c8] sm:$0xff]
        %v359 = vld [vmem:[%s237 + $0x1d0] sm:$0xff]
        %v360 = vld [vmem:[%s237 + $0x1d8] sm:$0xff]
        %v361 = vld [vmem:[%s237 + $0x1e0] sm:$0xff]
        %v362 = vld [vmem:[%s237 + $0x1e8] sm:$0xff]
        %v363 = vld [vmem:[%s237 + $0x1f0] sm:$0xff]
        %v364 = vld [vmem:[%s237 + $0x1f8] sm:$0xff]
        %v365 = vld [vmem:[%s237 + $0x200] sm:$0xff]
        %v366 = vld [vmem:[%s237 + $0x208] sm:$0xff]
        %v367 = vld [vmem:[%s237 + $0x210] sm:$0xff]
        %v368 = vld [vmem:[%s237 + $0x218] sm:$0xff]
        %v369 = vld [vmem:[%s237 + $0x220] sm:$0xff]
        %v370 = vld [vmem:[%s237 + $0x228] sm:$0xff]
        %v371 = vld [vmem:[%s237 + $0x230] sm:$0xff]
        %v372 = vld [vmem:[%s237 + $0x238] sm:$0xff]
        %v373 = vld [vmem:[%s237 + $0x240] sm:$0xff]
        %v374 = vld [vmem:[%s237 + $0x248] sm:$0xff]
        %v375 = vld [vmem:[%s237 + $0x250] sm:$0xff]
        %v376 = vld [vmem:[%s237 + $0x258] sm:$0xff]
        %v377 = vld [vmem:[%s237 + $0x260] sm:$0xff]
        %v378 = vld [vmem:[%s237 + $0x268] sm:$0xff]
        %v379 = vld [vmem:[%s237 + $0x270] sm:$0xff]
        %v380 = vld [vmem:[%s237 + $0x278] sm:$0xff]
        %v381 = vld [vmem:[%s237 + $0x280] sm:$0xff]
        %v382 = vld [vmem:[%s237 + $0x288] sm:$0xff]
        %v383 = vld [vmem:[%s237 + $0x290] sm:$0xff]
        %v384 = vld [vmem:[%s237 + $0x298] sm:$0xff]
        %v385 = vld [vmem:[%s237 + $0x2a0] sm:$0xff]
        %v386 = vld [vmem:[%s237 + $0x2a8] sm:$0xff]
        %v387 = vld [vmem:[%s237 + $0x2b0] sm:$0xff]
        %v388 = vld [vmem:[%s237 + $0x2b8] sm:$0xff]
        %v389 = vld [vmem:[%s237 + $0x2c0] sm:$0xff]
        %v390 = vld [vmem:[%s237 + $0x2c8] sm:$0xff]
        %v391 = vld [vmem:[%s237 + $0x2d0] sm:$0xff]
        %v392 = vld [vmem:[%s237 + $0x2d8] sm:$0xff]
        %v393 = vld [vmem:[%s237 + $0x2e0] sm:$0xff]
        %v394 = vld [vmem:[%s237 + $0x2e8] sm:$0xff]
        %v395 = vld [vmem:[%s237 + $0x2f0] sm:$0xff]
        %v396 = vld [vmem:[%s237 + $0x2f8] sm:$0xff]
        %397 = vmatprep.subr.mxu0 0.0
        %398 = vmatpush1.xpose.msra.mxu0 %v316
        %399 = vmatprep.subr.mxu0 0.0
        %400 = vmatpush1.xpose.msra.mxu0 %v315
        %401 = vmatprep.subr.mxu0 0.0
        %402 = vmatpush1.xpose.msra.mxu0 %v314
        %403 = vmatprep.subr.mxu0 0.0
        %404 = vmatpush1.xpose.msra.mxu0 %v313
        %405 = vmatprep.subr.mxu0 0.0
        %406 = vmatpush1.xpose.msra.mxu0 %v312
        %407 = vmatprep.subr.mxu0 0.0
        %408 = vmatpush1.xpose.msra.mxu0 %v311
        %409 = vmatprep.subr.mxu0 0.0
        %410 = vmatpush1.xpose.msra.mxu0 %v310
        %411 = vmatprep.subr.mxu0 0.0
        %412 = vmatpush1.xpose.msra.mxu0 %v309
        %413 = vmatprep.subr.mxu0 0.0
        %414 = vmatpush1.xpose.msra.mxu0 %v308
        %415 = vmatprep.subr.mxu0 0.0
        %416 = vmatpush1.xpose.msra.mxu0 %v307
        %417 = vmatprep.subr.mxu0 0.0
        %418 = vmatpush1.xpose.msra.mxu0 %v306
        %419 = vmatprep.subr.mxu0 0.0
        %420 = vmatpush1.xpose.msra.mxu0 %v305
        %421 = vmatprep.subr.mxu0 0.0
        %422 = vmatpush1.xpose.msra.mxu0 %v304
        %423 = vmatprep.subr.mxu0 0.0
        %424 = vmatpush1.xpose.msra.mxu0 %v303
        %425 = vmatprep.subr.mxu0 0.0
        %426 = vmatpush1.xpose.msra.mxu0 %v302
        %427 = vmatprep.subr.mxu0 0.0
        %428 = vmatpush1.xpose.msra.mxu0 %v301
        %429 = vmatprep.subr.mxu0 0.0
        %430 = vmatpush2.xpose.msra.mxu0 %v332
        %431 = vmatprep.subr.mxu0 0.0
        %432 = vmatpush2.xpose.msra.mxu0 %v331
        %433 = vmatprep.subr.mxu0 0.0
        %434 = vmatpush2.xpose.msra.mxu0 %v330
        %435 = vmatprep.subr.mxu0 0.0
        %436 = vmatpush2.xpose.msra.mxu0 %v329
        %437 = vmatprep.subr.mxu0 0.0
        %438 = vmatpush2.xpose.msra.mxu0 %v328
        %439 = vmatprep.subr.mxu0 0.0
        %440 = vmatpush2.xpose.msra.mxu0 %v327
        %441 = vmatprep.subr.mxu0 0.0
        %442 = vmatpush2.xpose.msra.mxu0 %v326
        %443 = vmatprep.subr.mxu0 0.0
        %444 = vmatpush2.xpose.msra.mxu0 %v325
        %445 = vmatprep.subr.mxu0 0.0
        %446 = vmatpush2.xpose.msra.mxu0 %v324
        %447 = vmatprep.subr.mxu0 0.0
        %448 = vmatpush2.xpose.msra.mxu0 %v323
        %449 = vmatprep.subr.mxu0 0.0
        %450 = vmatpush2.xpose.msra.mxu0 %v322
        %451 = vmatprep.subr.mxu0 0.0
        %452 = vmatpush2.xpose.msra.mxu0 %v321
        %453 = vmatprep.subr.mxu0 0.0
        %454 = vmatpush2.xpose.msra.mxu0 %v320
        %455 = vmatprep.subr.mxu0 0.0
        %456 = vmatpush2.xpose.msra.mxu0 %v319
        %457 = vmatprep.subr.mxu0 0.0
        %458 = vmatpush2.xpose.msra.mxu0 %v318
        %459 = vmatprep.subr.mxu0 0.0
        %460 = vmatpush2.xpose.msra.mxu0 %v317
        %461 = vmatprep.mubr.f32.mxu0 0.0
        %462 = vmatmul.mubr.f32.gmra.mxu0 %v299
        %v463 = vpop.f32.mrf.mxu0
        %v464 = vadd.f32 0.0, %v463
        %v465 = vpop.f32.mrf.mxu0
        %v466 = vadd.f32 0.0, %v465
        %467 = vmatprep.mubr.f32.mxu0 0.0
        %468 = vmatmul.mubr.f32.gmra.mxu0 %v300
        %v469 = vpop.f32.mrf.mxu0
        %v470 = vadd.f32 0.0, %v469
        %v471 = vpop.f32.mrf.mxu0
        %v472 = vadd.f32 0.0, %v471
        %473 = vdwg.mxu0
        %474 = vmatprep.subr.mxu0 0.0
        %475 = vmatpush1.xpose.msra.mxu0 %v348
        %476 = vmatprep.subr.mxu0 0.0
        %477 = vmatpush1.xpose.msra.mxu0 %v347
        %478 = vmatprep.subr.mxu0 0.0
        %479 = vmatpush1.xpose.msra.mxu0 %v346
        %480 = vmatprep.subr.mxu0 0.0
        %481 = vmatpush1.xpose.msra.mxu0 %v345
        %482 = vmatprep.subr.mxu0 0.0
        %483 = vmatpush1.xpose.msra.mxu0 %v344
        %484 = vmatprep.subr.mxu0 0.0
        %485 = vmatpush1.xpose.msra.mxu0 %v343
        %486 = vmatprep.subr.mxu0 0.0
        %487 = vmatpush1.xpose.msra.mxu0 %v342
        %488 = vmatprep.subr.mxu0 0.0
        %489 = vmatpush1.xpose.msra.mxu0 %v341
        %490 = vmatprep.subr.mxu0 0.0
        %491 = vmatpush1.xpose.msra.mxu0 %v340
        %492 = vmatprep.subr.mxu0 0.0
        %493 = vmatpush1.xpose.msra.mxu0 %v339
        %494 = vmatprep.subr.mxu0 0.0
        %495 = vmatpush1.xpose.msra.mxu0 %v338
        %496 = vmatprep.subr.mxu0 0.0
        %497 = vmatpush1.xpose.msra.mxu0 %v337
        %498 = vmatprep.subr.mxu0 0.0
        %499 = vmatpush1.xpose.msra.mxu0 %v336
        %500 = vmatprep.subr.mxu0 0.0
        %501 = vmatpush1.xpose.msra.mxu0 %v335
        %502 = vmatprep.subr.mxu0 0.0
        %503 = vmatpush1.xpose.msra.mxu0 %v334
        %504 = vmatprep.subr.mxu0 0.0
        %505 = vmatpush1.xpose.msra.mxu0 %v333
        %506 = vmatprep.subr.mxu0 0.0
        %507 = vmatpush2.xpose.msra.mxu0 %v364
        %508 = vmatprep.subr.mxu0 0.0
        %509 = vmatpush2.xpose.msra.mxu0 %v363
        %510 = vmatprep.subr.mxu0 0.0
        %511 = vmatpush2.xpose.msra.mxu0 %v362
        %512 = vmatprep.subr.mxu0 0.0
        %513 = vmatpush2.xpose.msra.mxu0 %v361
        %514 = vmatprep.subr.mxu0 0.0
        %515 = vmatpush2.xpose.msra.mxu0 %v360
        %516 = vmatprep.subr.mxu0 0.0
        %517 = vmatpush2.xpose.msra.mxu0 %v359
        %518 = vmatprep.subr.mxu0 0.0
        %519 = vmatpush2.xpose.msra.mxu0 %v358
        %520 = vmatprep.subr.mxu0 0.0
        %521 = vmatpush2.xpose.msra.mxu0 %v357
        %522 = vmatprep.subr.mxu0 0.0
        %523 = vmatpush2.xpose.msra.mxu0 %v356
        %524 = vmatprep.subr.mxu0 0.0
        %525 = vmatpush2.xpose.msra.mxu0 %v355
        %526 = vmatprep.subr.mxu0 0.0
        %527 = vmatpush2.xpose.msra.mxu0 %v354
        %528 = vmatprep.subr.mxu0 0.0
        %529 = vmatpush2.xpose.msra.mxu0 %v353
        %530 = vmatprep.subr.mxu0 0.0
        %531 = vmatpush2.xpose.msra.mxu0 %v352
        %532 = vmatprep.subr.mxu0 0.0
        %533 = vmatpush2.xpose.msra.mxu0 %v351
        %534 = vmatprep.subr.mxu0 0.0
        %535 = vmatpush2.xpose.msra.mxu0 %v350
        %536 = vmatprep.subr.mxu0 0.0
        %537 = vmatpush2.xpose.msra.mxu0 %v349
        %538 = vmatprep.mubr.f32.mxu0 0.0
        %539 = vmatmul.mubr.f32.gmra.mxu0 %v299
        %v540 = vpop.f32.mrf.mxu0
        %v541 = vadd.f32 0.0, %v540
        %v542 = vpop.f32.mrf.mxu0
        %v543 = vadd.f32 0.0, %v542
        %544 = vmatprep.mubr.f32.mxu0 0.0
        %545 = vmatmul.mubr.f32.gmra.mxu0 %v300
        %v546 = vpop.f32.mrf.mxu0
        %v547 = vadd.f32 0.0, %v546
        %v548 = vpop.f32.mrf.mxu0
        %v549 = vadd.f32 0.0, %v548
        %550 = vdwg.mxu0
        %551 = vmatprep.subr.mxu0 0.0
        %552 = vmatpush1.xpose.msra.mxu0 %v380
        %553 = vmatprep.subr.mxu0 0.0
        %554 = vmatpush1.xpose.msra.mxu0 %v379
        %555 = vmatprep.subr.mxu0 0.0
        %556 = vmatpush1.xpose.msra.mxu0 %v378
        %557 = vmatprep.subr.mxu0 0.0
        %558 = vmatpush1.xpose.msra.mxu0 %v377
        %559 = vmatprep.subr.mxu0 0.0
        %560 = vmatpush1.xpose.msra.mxu0 %v376
        %561 = vmatprep.subr.mxu0 0.0
        %562 = vmatpush1.xpose.msra.mxu0 %v375
        %563 = vmatprep.subr.mxu0 0.0
        %564 = vmatpush1.xpose.msra.mxu0 %v374
        %565 = vmatprep.subr.mxu0 0.0
        %566 = vmatpush1.xpose.msra.mxu0 %v373
        %567 = vmatprep.subr.mxu0 0.0
        %568 = vmatpush1.xpose.msra.mxu0 %v372
        %569 = vmatprep.subr.mxu0 0.0
        %570 = vmatpush1.xpose.msra.mxu0 %v371
        %571 = vmatprep.subr.mxu0 0.0
        %572 = vmatpush1.xpose.msra.mxu0 %v370
        %573 = vmatprep.subr.mxu0 0.0
        %574 = vmatpush1.xpose.msra.mxu0 %v369
        %575 = vmatprep.subr.mxu0 0.0
        %576 = vmatpush1.xpose.msra.mxu0 %v368
        %577 = vmatprep.subr.mxu0 0.0
        %578 = vmatpush1.xpose.msra.mxu0 %v367
        %579 = vmatprep.subr.mxu0 0.0
        %580 = vmatpush1.xpose.msra.mxu0 %v366
        %581 = vmatprep.subr.mxu0 0.0
        %582 = vmatpush1.xpose.msra.mxu0 %v365
        %583 = vmatprep.subr.mxu0 0.0
        %584 = vmatpush2.xpose.msra.mxu0 %v396
        %585 = vmatprep.subr.mxu0 0.0
        %586 = vmatpush2.xpose.msra.mxu0 %v395
        %587 = vmatprep.subr.mxu0 0.0
        %588 = vmatpush2.xpose.msra.mxu0 %v394
        %589 = vmatprep.subr.mxu0 0.0
        %590 = vmatpush2.xpose.msra.mxu0 %v393
        %591 = vmatprep.subr.mxu0 0.0
        %592 = vmatpush2.xpose.msra.mxu0 %v392
        %593 = vmatprep.subr.mxu0 0.0
        %594 = vmatpush2.xpose.msra.mxu0 %v391
        %595 = vmatprep.subr.mxu0 0.0
        %596 = vmatpush2.xpose.msra.mxu0 %v390
        %597 = vmatprep.subr.mxu0 0.0
        %598 = vmatpush2.xpose.msra.mxu0 %v389
        %599 = vmatprep.subr.mxu0 0.0
        %600 = vmatpush2.xpose.msra.mxu0 %v388
        %601 = vmatprep.subr.mxu0 0.0
        %602 = vmatpush2.xpose.msra.mxu0 %v387
        %603 = vmatprep.subr.mxu0 0.0
        %604 = vmatpush2.xpose.msra.mxu0 %v386
        %605 = vmatprep.subr.mxu0 0.0
        %606 = vmatpush2.xpose.msra.mxu0 %v385
        %607 = vmatprep.subr.mxu0 0.0
        %608 = vmatpush2.xpose.msra.mxu0 %v384
        %609 = vmatprep.subr.mxu0 0.0
        %610 = vmatpush2.xpose.msra.mxu0 %v383
        %611 = vmatprep.subr.mxu0 0.0
        %612 = vmatpush2.xpose.msra.mxu0 %v382
        %613 = vmatprep.subr.mxu0 0.0
        %614 = vmatpush2.xpose.msra.mxu0 %v381
        %615 = vmatprep.mubr.f32.mxu0 0.0
        %616 = vmatmul.mubr.f32.gmra.mxu0 %v299
        %v617 = vpop.f32.mrf.mxu0
        %v618 = vadd.f32 0.0, %v617
        %v619 = vpop.f32.mrf.mxu0
        %v620 = vadd.f32 0.0, %v619
        %621 = vmatprep.mubr.f32.mxu0 0.0
        %622 = vmatmul.mubr.f32.gmra.mxu0 %v300
        %v623 = vpop.f32.mrf.mxu0
        %v624 = vadd.f32 0.0, %v623
        %v625 = vpop.f32.mrf.mxu0
        %v626 = vadd.f32 0.0, %v625
        %627 = vdwg.mxu0
        %v628 = vadd.f32 %v287, %v464
        %v629 = vadd.f32 %v288, %v466
        %v630 = vadd.f32 %v289, %v541
        %v631 = vadd.f32 %v290, %v543
        %v632 = vadd.f32 %v291, %v618
        %v633 = vadd.f32 %v292, %v620
        %v634 = vadd.f32 %v293, %v470
        %v635 = vadd.f32 %v294, %v472
        %v636 = vadd.f32 %v295, %v547
        %v637 = vadd.f32 %v296, %v549
        %v638 = vadd.f32 %v297, %v624
        %v639 = vadd.f32 %v298, %v626
        %640 = vst [vmem:[#allocation2] sm:$0xff] %v628
        %641 = vst [vmem:[#allocation2 + $0x8] sm:$0xff] %v629
        %642 = vst [vmem:[#allocation2 + $0x10] sm:$0xff] %v630
        %643 = vst [vmem:[#allocation2 + $0x18] sm:$0xff] %v631
        %644 = vst [vmem:[#allocation2 + $0x20] sm:$0xff] %v632
        %645 = vst [vmem:[#allocation2 + $0x28] sm:$0xff] %v633
        %646 = vst [vmem:[#allocation2 + $0x30] sm:$0xff] %v634
        %647 = vst [vmem:[#allocation2 + $0x38] sm:$0xff] %v635
        %648 = vst [vmem:[#allocation2 + $0x40] sm:$0xff] %v636
        %649 = vst [vmem:[#allocation2 + $0x48] sm:$0xff] %v637
        %650 = vst [vmem:[#allocation2 + $0x50] sm:$0xff] %v638
        %651 = vst [vmem:[#allocation2 + $0x58] sm:$0xff] %v639
        %p652 = scmp.eq.s32.totalorder %s30, 1
        // Predicated region
        $region49: #{tpu_custom_call.1} parent=31 // pred_check
          %p653 = pneg %p652
        $region50: #{tpu_custom_call.1} parent=31 // pred_check_branch
          %655 = sbr.rel (%p653) target = $region52
        $region51: #{tpu_custom_call.1} parent=31 // pred_region
          %v656 = vld [vmem:[#allocation2] sm:$0xff]
          %v657 = vld [vmem:[#allocation2 + $0x8] sm:$0xff]
          %v658 = vld [vmem:[#allocation2 + $0x10] sm:$0xff]
          %v659 = vld [vmem:[#allocation2 + $0x18] sm:$0xff]
          %v660 = vld [vmem:[#allocation2 + $0x20] sm:$0xff]
          %v661 = vld [vmem:[#allocation2 + $0x28] sm:$0xff]
          %v662 = vld [vmem:[#allocation2 + $0x30] sm:$0xff]
          %v663 = vld [vmem:[#allocation2 + $0x38] sm:$0xff]
          %v664 = vld [vmem:[#allocation2 + $0x40] sm:$0xff]
          %v665 = vld [vmem:[#allocation2 + $0x48] sm:$0xff]
          %v666 = vld [vmem:[#allocation2 + $0x50] sm:$0xff]
          %v667 = vld [vmem:[#allocation2 + $0x58] sm:$0xff]
          %v668 = vld [vmem:[#allocation8] sm:$0x3f]
          %v670 = vlaneseq
          %v671 = vshrl.u32 %v670, 7
          %v672 = vsub.s32 0, %v671
          %v673 = vrot.slane %v668, %v672
          %v674 = vlaneseq
          %v675 = vshrl.u32 %v674, 7
          %v676 = vsub.s32 1, %v675
          %v677 = vrot.slane %v668, %v676
          %v678 = vlaneseq
          %v679 = vshrl.u32 %v678, 7
          %v680 = vsub.s32 2, %v679
          %v681 = vrot.slane %v668, %v680
          %v682 = vlaneseq
          %v683 = vshrl.u32 %v682, 7
          %v684 = vsub.s32 3, %v683
          %v685 = vrot.slane %v668, %v684
          %v686 = vlaneseq
          %v687 = vshrl.u32 %v686, 7
          %v688 = vsub.s32 4, %v687
          %v689 = vrot.slane %v668, %v688
          %v690 = vlaneseq
          %v691 = vshrl.u32 %v690, 7
          %v692 = vsub.s32 5, %v691
          %v693 = vrot.slane %v668, %v692
          %v700 = vadd.f32 %v656, %v673
          %v701 = vadd.f32 %v657, %v677
          %v702 = vadd.f32 %v658, %v681
          %v703 = vadd.f32 %v659, %v685
          %v704 = vadd.f32 %v660, %v689
          %v705 = vadd.f32 %v661, %v693
          %v706 = vadd.f32 %v662, %v673
          %v707 = vadd.f32 %v663, %v677
          %v708 = vadd.f32 %v664, %v681
          %v709 = vadd.f32 %v665, %v685
          %v710 = vadd.f32 %v666, %v689
          %v711 = vadd.f32 %v667, %v693
          %vm712 = vcmask 523264
          %713 = vst.msk [vmem:[%s268] sm:$0xff] %vm712, %v700
          %714 = vst.msk [vmem:[%s268 + $0x8] sm:$0xff] %vm712, %v706
          %717 = vrot.lane.b32.xlu0 %v700, 64
          %v718 = vpop.permute.xlu0 %717
          %719 = vrot.lane.b32.xlu0 %v706, 64
          %v720 = vpop.permute.xlu0 %719
          %s723 = scalar_lea.vmem %s268, 16 [#allocation9]
          %724 = vst.msk [vmem:[%s723] sm:$0xff] %vm712, %v718
          %725 = vst.msk [vmem:[%s723 + $0x8] sm:$0xff] %vm712, %v720
          %s726 = scalar_lea.vmem %s268, 32 [#allocation9]
          %727 = vst.msk [vmem:[%s726] sm:$0xff] %vm712, %v701
          %728 = vst.msk [vmem:[%s726 + $0x8] sm:$0xff] %vm712, %v707
          %731 = vrot.lane.b32.xlu0 %v701, 64
          %v732 = vpop.permute.xlu0 %731
          %733 = vrot.lane.b32.xlu0 %v707, 64
          %v734 = vpop.permute.xlu0 %733
          %s737 = scalar_lea.vmem %s268, 48 [#allocation9]
          %738 = vst.msk [vmem:[%s737] sm:$0xff] %vm712, %v732
          %739 = vst.msk [vmem:[%s737 + $0x8] sm:$0xff] %vm712, %v734
          %s740 = scalar_lea.vmem %s268, 64 [#allocation9]
          %741 = vst.msk [vmem:[%s740] sm:$0xff] %vm712, %v702
          %742 = vst.msk [vmem:[%s740 + $0x8] sm:$0xff] %vm712, %v708
          %745 = vrot.lane.b32.xlu0 %v702, 64
          %v746 = vpop.permute.xlu0 %745
          %747 = vrot.lane.b32.xlu0 %v708, 64
          %v748 = vpop.permute.xlu0 %747
          %s751 = scalar_lea.vmem %s268, 80 [#allocation9]
          %752 = vst.msk [vmem:[%s751] sm:$0xff] %vm712, %v746
          %753 = vst.msk [vmem:[%s751 + $0x8] sm:$0xff] %vm712, %v748
          %s754 = scalar_lea.vmem %s268, 96 [#allocation9]
          %755 = vst.msk [vmem:[%s754] sm:$0xff] %vm712, %v703
          %756 = vst.msk [vmem:[%s754 + $0x8] sm:$0xff] %vm712, %v709
          %759 = vrot.lane.b32.xlu0 %v703, 64
          %v760 = vpop.permute.xlu0 %759
          %761 = vrot.lane.b32.xlu0 %v709, 64
          %v762 = vpop.permute.xlu0 %761
          %s765 = scalar_lea.vmem %s268, 112 [#allocation9]
          %766 = vst.msk [vmem:[%s765] sm:$0xff] %vm712, %v760
          %767 = vst.msk [vmem:[%s765 + $0x8] sm:$0xff] %vm712, %v762
          %s768 = scalar_lea.vmem %s268, 128 [#allocation9]
          %769 = vst.msk [vmem:[%s768] sm:$0xff] %vm712, %v704
          %770 = vst.msk [vmem:[%s768 + $0x8] sm:$0xff] %vm712, %v710
          %773 = vrot.lane.b32.xlu0 %v704, 64
          %v774 = vpop.permute.xlu0 %773
          %775 = vrot.lane.b32.xlu0 %v710, 64
          %v776 = vpop.permute.xlu0 %775
          %s779 = scalar_lea.vmem %s268, 144 [#allocation9]
          %780 = vst.msk [vmem:[%s779] sm:$0xff] %vm712, %v774
          %781 = vst.msk [vmem:[%s779 + $0x8] sm:$0xff] %vm712, %v776
          %s782 = scalar_lea.vmem %s268, 160 [#allocation9]
          %783 = vst.msk [vmem:[%s782] sm:$0xff] %vm712, %v705
          %784 = vst.msk [vmem:[%s782 + $0x8] sm:$0xff] %vm712, %v711
          %787 = vrot.lane.b32.xlu0 %v705, 64
          %v788 = vpop.permute.xlu0 %787
          %789 = vrot.lane.b32.xlu0 %v711, 64
          %v790 = vpop.permute.xlu0 %789
          %s793 = scalar_lea.vmem %s268, 176 [#allocation9]
          %794 = vst.msk [vmem:[%s793] sm:$0xff] %vm712, %v788
          %795 = vst.msk [vmem:[%s793 + $0x8] sm:$0xff] %vm712, %v790
        $region52: #{tpu_custom_call.1} parent=31 // pred_fallthru
          _
        %s796 = sand.u32 %s129, 1
        %s797 = scalar_lea.sflag [#allocation5], %s796
        %s798 = sand.u32 %s129, 1
        %s799 = smul.addr %s798, 192
        %s800 = scalar_lea.vmem [#allocation9], %s799
        // Predicated region
        $region53: #{tpu_custom_call.1} parent=31 // pred_check
          %p801 = pneg %p139
        $region54: #{tpu_custom_call.1} parent=31 // pred_check_branch
          %803 = sbr.rel (%p801) target = $region56
        $region55: #{tpu_custom_call.1} parent=31 // pred_region
          %s804 = smul.u32 2, %s29
          %s806 = ssub.s32 3072, 3072
          %807 = vsyncadd %s797, %s806
          %s808 = smul.addr %s28, 24
          %s809 = sadd.s32 %s804, %s808
          %s810 = smul.addr %s809, 128
          %s811 = scalar_lea.hbm %s3, %s810
          %s812 = sshll.u32 %s800, 4
          %s813 = int_to_ptr.vmem [resolvable:$true] %s812
          %818 = dma.vmem_to_hbm [thread:$0]  %s813, 3072, %s811, %s797, 128, 128, 8
        $region56: #{tpu_custom_call.1} parent=31 // pred_fallthru
          _
      $region32: #{tpu_custom_call.1} parent=5 // pred_fallthru
        _
      %p819 = scmp.le.s32.totalorder 2, %s18
      // Predicated region
      $region57: #{tpu_custom_call.1} parent=5 // pred_check
        %p820 = pneg %p819
      $region58: #{tpu_custom_call.1} parent=5 // pred_check_branch
        %822 = sbr.rel (%p820) target = $region60
      $region59: #{tpu_custom_call.1} parent=5 // pred_region
        %s823 = ssub.s32 %s18, 2
        // Predicated region
        $region61: #{tpu_custom_call.1} parent=59 // pred_check
          %p824 = pneg %p145
        $region62: #{tpu_custom_call.1} parent=59 // pred_check_branch
          %826 = sbr.rel (%p824) target = $region64
        $region63: #{tpu_custom_call.1} parent=59 // pred_region
          %s827 = sand.u32 %s130, 1
          %s828 = scalar_lea.sflag [#allocation5], %s827
          %s829 = sand.u32 %s130, 1
          %s830 = smul.addr %s829, 192
          %s831 = scalar_lea.vmem [#allocation9], %s830
          %832 = dma.done %s828, 3072
        $region64: #{tpu_custom_call.1} parent=59 // pred_fallthru
          _
      $region60: #{tpu_custom_call.1} parent=5 // pred_fallthru
        _
    $region6: #{tpu_custom_call.1} parent=1 // loop_footer
      %s22 = sadd.s32 1, %s18
    $region7: #{tpu_custom_call.1} parent=1 // loop_footer_branch
      %17 = sbr.rel target = $region3
    $region8: #{tpu_custom_call.1} parent=1 // loop_exit
      _
    %833 = vsyncpa [#allocation4], 1
    %s834 = scalar_lea.sflag [#allocation4], 1
    %835 = vsyncpa %s834, 1
    %836 = vsyncpa [#allocation7], 1
    %s837 = scalar_lea.sflag [#allocation7], 1
    %838 = vsyncpa %s837, 1
    %839 = vsyncpa [#allocation5], 1
    %s840 = scalar_lea.sflag [#allocation5], 1
    %841 = vsyncpa %s840, 1

</llo_original>
